<compile_context>
chip_gen: v7x
topology: tpu7x:2x2x1
jax: 0.10.0
libtpu: 0.0.40
codegen_flags: <defaults>
</compile_context>

<pallas_src>
from functools import partial

import jax
import jax.numpy as jnp
from jax.experimental import pallas as pl
from jax.experimental.pallas import tpu as pltpu


def gated_equivariant_kernel(
    x_ref,      # (T, H)     f32   scalar features tile
    v_ref,      # (T, 3*H)   f32   vector features tile, spatial packed along lanes
    w1_ref,     # (H, H)     bf16  vec1_proj weight (transposed: y = v @ w1)
    w2_ref,     # (H, O)     bf16  vec2_proj weight (transposed)
    wu1x_ref,   # (H, I)     bf16  update_net[0] weight, x half   (split-K)
    wu1v_ref,   # (H, I)     bf16  update_net[0] weight, vec half (split-K)
    bu1_ref,    # (1, I)     f32
    wu2x_ref,   # (I, O)     bf16  update_net[2] weight, x half
    bu2x_ref,   # (1, O)     f32
    wu2g_ref,   # (I, O)     bf16  update_net[2] weight, gate half
    bu2g_ref,   # (1, O)     f32
    xout_ref,   # (T, O)     f32
    vout_ref,   # (T, 3*O)   f32   gated vectors, spatial packed along lanes
):
    H = w1_ref.shape[0]
    O = w2_ref.shape[1]
    bf16 = jnp.bfloat16

    # In-VMEM casts of the three spatial slabs of v (lane slices of the packed tile).
    v_slabs = [v_ref[:, k * H:(k + 1) * H].astype(bf16) for k in range(3)]

    # vec1 = || vec1_proj(v) ||_2 over the spatial axis: three (T,H)@(H,H) dots,
    # accumulate squares in f32.
    p0 = jnp.dot(v_slabs[0], w1_ref[...], preferred_element_type=jnp.float32)
    p1 = jnp.dot(v_slabs[1], w1_ref[...], preferred_element_type=jnp.float32)
    p2 = jnp.dot(v_slabs[2], w1_ref[...], preferred_element_type=jnp.float32)
    vec1 = jnp.sqrt(p0 * p0 + p1 * p1 + p2 * p2)                       # (T, H) f32

    # update_net[0] as split-K (no (T, 2H) concat temp):
    #   h = x @ Wx + vec1 @ Wv + b
    h = (jnp.dot(x_ref[...].astype(bf16), wu1x_ref[...],
                 preferred_element_type=jnp.float32)
         + jnp.dot(vec1.astype(bf16), wu1v_ref[...],
                   preferred_element_type=jnp.float32)
         + bu1_ref[...])                                               # (T, I) f32
    # Exact SiLU (EUP exp + VPU divide; hidden under the mem-bound roofline).
    h = h * (1.0 / (1.0 + jnp.exp(-h)))

    # update_net[2]: split into lane-aligned x / gate halves.
    hb = h.astype(bf16)
    x_new = jnp.dot(hb, wu2x_ref[...], preferred_element_type=jnp.float32) + bu2x_ref[...]
    gate = jnp.dot(hb, wu2g_ref[...], preferred_element_type=jnp.float32) + bu2g_ref[...]

    # scalar_activation=False in the reference construction -> no activation on x.
    xout_ref[...] = x_new.astype(xout_ref.dtype)

    # vec2_proj + gating, stored directly into lane slices of the output tile
    # (no (T, 3O) concat temp / extra store pass).
    for k in range(3):
        vec2_k = jnp.dot(v_slabs[k], w2_ref[...],
                         preferred_element_type=jnp.float32)           # (T, O) f32
        vout_ref[:, k * O:(k + 1) * O] = (gate * vec2_k).astype(vout_ref.dtype)


def _round_up(a, m):
    return ((a + m - 1) // m) * m


@partial(jax.jit, static_argnames=("tile_n",))
def gated_equivariant_block(x, v, kp, *, tile_n=1024):
    """x: (N, H) f32, v: (N, 3, H) f32, kp: prepared (bf16) params.

    Returns (x_out (N, O) f32, v_out (N, 3, O) f32).
    """
    N, H = x.shape
    O = kp["w2"].shape[1]
    I = kp["wu1x"].shape[1]

    v2 = v.reshape(N, 3 * H)                     # free contiguous reshape, no transpose

    # Effective row tile: multiple of 8, never much larger than N, and capped so the
    # grid has >=2 steps whenever possible (so ("parallel",) can shard across v7x's
    # two TensorCores).  Per-step overhead (~0.35 us) is negligible next to that.
    tn = min(tile_n, _round_up(N, 8))
    if N > 8:
        tn = min(tn, max(8, _round_up(pl.cdiv(N, 2), 8)))
    grid = (pl.cdiv(N, tn),)

    row = lambda shape: pl.BlockSpec(shape, lambda i: (i, 0))          # tiled over N
    res = lambda shape: pl.BlockSpec(shape, lambda i: (0, 0))          # VMEM-resident

    x_out, v_out = pl.pallas_call(
        gated_equivariant_kernel,
        grid=grid,
        out_shape=(
            jax.ShapeDtypeStruct((N, O), jnp.float32),
            jax.ShapeDtypeStruct((N, 3 * O), jnp.float32),
        ),
        in_specs=[
            row((tn, H)),            # x  (f32, cast in-kernel)
            row((tn, 3 * H)),        # v  (f32, cast in-kernel)
            res((H, H)),             # w1
            res((H, O)),             # w2
            res((H, I)),             # wu1x
            res((H, I)),             # wu1v
            res((1, I)),             # bu1
            res((I, O)),             # wu2x
            res((1, O)),             # bu2x
            res((I, O)),             # wu2g
            res((1, O)),             # bu2g
        ],
        out_specs=(
            row((tn, O)),
            row((tn, 3 * O)),
        ),
        compiler_params=pltpu.CompilerParams(
            dimension_semantics=("parallel",),    # 2x on v7x (2 TCs); harmless elsewhere
            vmem_limit_bytes=48 * 1024 * 1024,    # safe within v7x's 64 MiB physical VMEM
        ),
    )(
        x, v2,
        kp["w1"], kp["w2"], kp["wu1x"], kp["wu1v"], kp["bu1"],
        kp["wu2x"], kp["bu2x"], kp["wu2g"], kp["bu2g"],
    )
    return x_out, v_out.reshape(N, 3, O)


# ----------------------------------------------------------------------------- params


def _xavier(key, fan_in, fan_out):
    # xavier_uniform as in reset_parameters()
    limit = (6.0 / (fan_in + fan_out)) ** 0.5
    return jax.random.uniform(key, (fan_in, fan_out), jnp.float32, -limit, limit)


def init_params(key, hidden_channels, out_channels, intermediate_channels=None):
    """f32 parameters, stored transposed (in, out), so y = x @ W."""
    if intermediate_channels is None:
        intermediate_channels = hidden_channels
    H, O, I = hidden_channels, out_channels, intermediate_channels
    k = jax.random.split(key, 4)
    w1 = _xavier(k[0], H, H)                   # vec1_proj
    w2 = _xavier(k[1], H, O)                   # vec2_proj
    wu1 = _xavier(k[2], 2 * H, I)              # update_net[0]
    wu2 = _xavier(k[3], I, 2 * O)              # update_net[2]
    return dict(
        w1=w1, w2=w2, wu1=wu1,
        bu1=jnp.zeros((1, I), jnp.float32),
        wu2x=wu2[:, :O],                       # first O columns -> x output
        wu2g=wu2[:, O:],                       # last O columns  -> gate
        bu2x=jnp.zeros((1, O), jnp.float32),
        bu2g=jnp.zeros((1, O), jnp.float32),
    )


def prepare_params(params):
    """One-time (outside jit): bf16 weight copies + split-K split of update_net[0]."""
    bf16 = jnp.bfloat16
    H = params["w1"].shape[0]
    return dict(
        w1=params["w1"].astype(bf16),
        w2=params["w2"].astype(bf16),
        wu1x=params["wu1"][:H].astype(bf16),
        wu1v=params["wu1"][H:].astype(bf16),
        bu1=params["bu1"],
        wu2x=params["wu2x"].astype(bf16),
        bu2x=params["bu2x"],
        wu2g=params["wu2g"].astype(bf16),
        bu2g=params["bu2g"],
    )


def reference(x, v, p):
    """Pure-JAX f32 reference mirroring the PyTorch forward (scalar_activation=False)."""
    vec1 = jnp.linalg.norm(jnp.einsum("nkh,hj->nkj", v, p["w1"]), axis=-2)
    vec2 = jnp.einsum("nkh,ho->nko", v, p["w2"])
    h = jnp.concatenate([x, vec1], axis=-1) @ p["wu1"] + p["bu1"]
    h = jax.nn.silu(h)
    x_out = h @ p["wu2x"] + p["bu2x"]
    gate = h @ p["wu2g"] + p["bu2g"]
    v_out = gate[:, None, :] * vec2
    return x_out, v_out


if __name__ == "__main__":
    N, H, O = 24, 32, 16
    key = jax.random.PRNGKey(0)
    kx, kv, kp = jax.random.split(key, 3)
    x = jax.random.normal(kx, (N, H), jnp.float32)
    v = jax.random.normal(kv, (N, 3, H), jnp.float32)
    params = init_params(kp, H, O)
    kernel_params = prepare_params(params)     # hoisted bf16 casts / weight split

    # tile_n=8 -> 3 row tiles, exercises the grid / pipelining path.
    x_out, v_out = gated_equivariant_block(x, v, kernel_params, tile_n=8)
    jax.block_until_ready((x_out, v_out))

    x_ref, v_ref = reference(x, v, params)
    assert x_out.shape == (N, O) and v_out.shape == (N, 3, O)
    # bf16 MXU operands (f32 accumulation) -> relaxed tolerance vs the f32 reference.
    assert jnp.allclose(x_out, x_ref, atol=5e-2, rtol=5e-2), \
        float(jnp.max(jnp.abs(x_out - x_ref)))
    assert jnp.allclose(v_out, v_ref, atol=5e-2, rtol=5e-2), \
        float(jnp.max(jnp.abs(v_out - v_ref)))
    print("KERNEL_OK")
</pallas_src>

<mosaic_0001>
module attributes {stable_mosaic.version = 11 : i64} {
  func.func @gated_equivariant_kernel(%arg0: i32, %arg1: memref<8x32xf32, #tpu.memory_space<vmem>>, %arg2: memref<8x96xf32, #tpu.memory_space<vmem>>, %arg3: memref<32x32xbf16, #tpu.memory_space<vmem>>, %arg4: memref<32x16xbf16, #tpu.memory_space<vmem>>, %arg5: memref<32x32xbf16, #tpu.memory_space<vmem>>, %arg6: memref<32x32xbf16, #tpu.memory_space<vmem>>, %arg7: memref<1x32xf32, #tpu.memory_space<vmem>>, %arg8: memref<32x16xbf16, #tpu.memory_space<vmem>>, %arg9: memref<1x16xf32, #tpu.memory_space<vmem>>, %arg10: memref<32x16xbf16, #tpu.memory_space<vmem>>, %arg11: memref<1x16xf32, #tpu.memory_space<vmem>>, %arg12: memref<8x16xf32, #tpu.memory_space<vmem>>, %arg13: memref<8x48xf32, #tpu.memory_space<vmem>>) attributes {dimension_semantics = [#tpu.dimension_semantics<parallel>], iteration_bounds = array<i64: 3>, scalar_prefetch = 0 : i64, scratch_operands = 0 : i64, tpu.core_type = #tpu.core_type<tc>, window_params = [{transform_indices = @transform_0, window_bounds = array<i64: 8, 32>}, {transform_indices = @transform_1, window_bounds = array<i64: 8, 96>}, {pipeline_mode = #tpu.pipeline_mode<synchronous>, transform_indices = @transform_2, window_bounds = array<i64: 32, 32>}, {pipeline_mode = #tpu.pipeline_mode<synchronous>, transform_indices = @transform_3, window_bounds = array<i64: 32, 16>}, {pipeline_mode = #tpu.pipeline_mode<synchronous>, transform_indices = @transform_4, window_bounds = array<i64: 32, 32>}, {pipeline_mode = #tpu.pipeline_mode<synchronous>, transform_indices = @transform_5, window_bounds = array<i64: 32, 32>}, {pipeline_mode = #tpu.pipeline_mode<synchronous>, transform_indices = @transform_6, window_bounds = array<i64: 1, 32>}, {pipeline_mode = #tpu.pipeline_mode<synchronous>, transform_indices = @transform_7, window_bounds = array<i64: 32, 16>}, {pipeline_mode = #tpu.pipeline_mode<synchronous>, transform_indices = @transform_8, window_bounds = array<i64: 1, 16>}, {pipeline_mode = #tpu.pipeline_mode<synchronous>, transform_indices = @transform_9, window_bounds = array<i64: 32, 16>}, {pipeline_mode = #tpu.pipeline_mode<synchronous>, transform_indices = @transform_10, window_bounds = array<i64: 1, 16>}, {transform_indices = @transform_11, window_bounds = array<i64: 8, 16>}, {transform_indices = @transform_12, window_bounds = array<i64: 8, 48>}]} {
    %c0 = arith.constant 0 : index
    %c0_0 = arith.constant 0 : index
    %0 = vector.load %arg2[%c0, %c0_0] : memref<8x96xf32, #tpu.memory_space<vmem>>, vector<8x32xf32>
    %1 = arith.truncf %0 : vector<8x32xf32> to vector<8x32xbf16>
    %c0_1 = arith.constant 0 : index
    %c32 = arith.constant 32 : index
    %2 = vector.load %arg2[%c0_1, %c32] : memref<8x96xf32, #tpu.memory_space<vmem>>, vector<8x32xf32>
    %3 = arith.truncf %2 : vector<8x32xf32> to vector<8x32xbf16>
    %c0_2 = arith.constant 0 : index
    %c64 = arith.constant 64 : index
    %4 = vector.load %arg2[%c0_2, %c64] : memref<8x96xf32, #tpu.memory_space<vmem>>, vector<8x32xf32>
    %5 = arith.truncf %4 : vector<8x32xf32> to vector<8x32xbf16>
    %c0_3 = arith.constant 0 : index
    %c0_4 = arith.constant 0 : index
    %6 = vector.load %arg3[%c0_3, %c0_4] : memref<32x32xbf16, #tpu.memory_space<vmem>>, vector<32x32xbf16>
    %cst = arith.constant dense<0.000000e+00> : vector<8x32xf32>
    %7 = tpu.matmul %1, %6, %cst {dimension_numbers = #tpu.dot_dimension_numbers<[1], [0], [0], [1], [0, 0, 1, 1], [], []>} : vector<8x32xbf16>, vector<32x32xbf16>, vector<8x32xf32> -> vector<8x32xf32>
    %c0_5 = arith.constant 0 : index
    %c0_6 = arith.constant 0 : index
    %8 = vector.load %arg3[%c0_5, %c0_6] : memref<32x32xbf16, #tpu.memory_space<vmem>>, vector<32x32xbf16>
    %cst_7 = arith.constant dense<0.000000e+00> : vector<8x32xf32>
    %9 = tpu.matmul %3, %8, %cst_7 {dimension_numbers = #tpu.dot_dimension_numbers<[1], [0], [0], [1], [0, 0, 1, 1], [], []>} : vector<8x32xbf16>, vector<32x32xbf16>, vector<8x32xf32> -> vector<8x32xf32>
    %c0_8 = arith.constant 0 : index
    %c0_9 = arith.constant 0 : index
    %10 = vector.load %arg3[%c0_8, %c0_9] : memref<32x32xbf16, #tpu.memory_space<vmem>>, vector<32x32xbf16>
    %cst_10 = arith.constant dense<0.000000e+00> : vector<8x32xf32>
    %11 = tpu.matmul %5, %10, %cst_10 {dimension_numbers = #tpu.dot_dimension_numbers<[1], [0], [0], [1], [0, 0, 1, 1], [], []>} : vector<8x32xbf16>, vector<32x32xbf16>, vector<8x32xf32> -> vector<8x32xf32>
    %12 = arith.mulf %7, %7 : vector<8x32xf32>
    %13 = arith.mulf %9, %9 : vector<8x32xf32>
    %14 = arith.addf %12, %13 : vector<8x32xf32>
    %15 = arith.mulf %11, %11 : vector<8x32xf32>
    %16 = arith.addf %14, %15 : vector<8x32xf32>
    %17 = math.sqrt %16 : vector<8x32xf32>
    %c0_11 = arith.constant 0 : index
    %c0_12 = arith.constant 0 : index
    %18 = vector.load %arg1[%c0_11, %c0_12] : memref<8x32xf32, #tpu.memory_space<vmem>>, vector<8x32xf32>
    %19 = arith.truncf %18 : vector<8x32xf32> to vector<8x32xbf16>
    %c0_13 = arith.constant 0 : index
    %c0_14 = arith.constant 0 : index
    %20 = vector.load %arg5[%c0_13, %c0_14] : memref<32x32xbf16, #tpu.memory_space<vmem>>, vector<32x32xbf16>
    %cst_15 = arith.constant dense<0.000000e+00> : vector<8x32xf32>
    %21 = tpu.matmul %19, %20, %cst_15 {dimension_numbers = #tpu.dot_dimension_numbers<[1], [0], [0], [1], [0, 0, 1, 1], [], []>} : vector<8x32xbf16>, vector<32x32xbf16>, vector<8x32xf32> -> vector<8x32xf32>
    %22 = arith.truncf %17 : vector<8x32xf32> to vector<8x32xbf16>
    %c0_16 = arith.constant 0 : index
    %c0_17 = arith.constant 0 : index
    %23 = vector.load %arg6[%c0_16, %c0_17] : memref<32x32xbf16, #tpu.memory_space<vmem>>, vector<32x32xbf16>
    %cst_18 = arith.constant dense<0.000000e+00> : vector<8x32xf32>
    %24 = tpu.matmul %22, %23, %cst_18 {dimension_numbers = #tpu.dot_dimension_numbers<[1], [0], [0], [1], [0, 0, 1, 1], [], []>} : vector<8x32xbf16>, vector<32x32xbf16>, vector<8x32xf32> -> vector<8x32xf32>
    %25 = arith.addf %21, %24 : vector<8x32xf32>
    %c0_19 = arith.constant 0 : index
    %c0_20 = arith.constant 0 : index
    %26 = vector.load %arg7[%c0_19, %c0_20] : memref<1x32xf32, #tpu.memory_space<vmem>>, vector<1x32xf32>
    %27 = vector.broadcast %26 : vector<1x32xf32> to vector<8x32xf32>
    %28 = arith.addf %25, %27 : vector<8x32xf32>
    %cst_21 = arith.constant 0.000000e+00 : f32
    %29 = vector.broadcast %cst_21 : f32 to vector<8x32xf32>
    %30 = arith.subf %29, %28 : vector<8x32xf32>
    %31 = math.exp %30 : vector<8x32xf32>
    %cst_22 = arith.constant 1.000000e+00 : f32
    %32 = vector.broadcast %cst_22 : f32 to vector<8x32xf32>
    %33 = arith.addf %32, %31 : vector<8x32xf32>
    %cst_23 = arith.constant 1.000000e+00 : f32
    %34 = vector.broadcast %cst_23 : f32 to vector<8x32xf32>
    %35 = arith.divf %34, %33 : vector<8x32xf32>
    %36 = arith.mulf %28, %35 : vector<8x32xf32>
    %37 = arith.truncf %36 : vector<8x32xf32> to vector<8x32xbf16>
    %c0_24 = arith.constant 0 : index
    %c0_25 = arith.constant 0 : index
    %38 = vector.load %arg8[%c0_24, %c0_25] : memref<32x16xbf16, #tpu.memory_space<vmem>>, vector<32x16xbf16>
    %cst_26 = arith.constant dense<0.000000e+00> : vector<8x16xf32>
    %39 = tpu.matmul %37, %38, %cst_26 {dimension_numbers = #tpu.dot_dimension_numbers<[1], [0], [0], [1], [0, 0, 1, 1], [], []>} : vector<8x32xbf16>, vector<32x16xbf16>, vector<8x16xf32> -> vector<8x16xf32>
    %c0_27 = arith.constant 0 : index
    %c0_28 = arith.constant 0 : index
    %40 = vector.load %arg9[%c0_27, %c0_28] : memref<1x16xf32, #tpu.memory_space<vmem>>, vector<1x16xf32>
    %41 = vector.broadcast %40 : vector<1x16xf32> to vector<8x16xf32>
    %42 = arith.addf %39, %41 : vector<8x16xf32>
    %c0_29 = arith.constant 0 : index
    %c0_30 = arith.constant 0 : index
    %43 = vector.load %arg10[%c0_29, %c0_30] : memref<32x16xbf16, #tpu.memory_space<vmem>>, vector<32x16xbf16>
    %cst_31 = arith.constant dense<0.000000e+00> : vector<8x16xf32>
    %44 = tpu.matmul %37, %43, %cst_31 {dimension_numbers = #tpu.dot_dimension_numbers<[1], [0], [0], [1], [0, 0, 1, 1], [], []>} : vector<8x32xbf16>, vector<32x16xbf16>, vector<8x16xf32> -> vector<8x16xf32>
    %c0_32 = arith.constant 0 : index
    %c0_33 = arith.constant 0 : index
    %45 = vector.load %arg11[%c0_32, %c0_33] : memref<1x16xf32, #tpu.memory_space<vmem>>, vector<1x16xf32>
    %46 = vector.broadcast %45 : vector<1x16xf32> to vector<8x16xf32>
    %47 = arith.addf %44, %46 : vector<8x16xf32>
    %c0_34 = arith.constant 0 : index
    %c0_35 = arith.constant 0 : index
    %48 = vector.load %arg12[%c0_34, %c0_35] : memref<8x16xf32, #tpu.memory_space<vmem>>, vector<8x16xf32>
    tpu.vector_store %arg12[%c0_34, %c0_35], %42 {strides = array<i32>} : memref<8x16xf32, #tpu.memory_space<vmem>>, vector<8x16xf32>,
    %c0_36 = arith.constant 0 : index
    %c0_37 = arith.constant 0 : index
    %49 = vector.load %arg4[%c0_36, %c0_37] : memref<32x16xbf16, #tpu.memory_space<vmem>>, vector<32x16xbf16>
    %cst_38 = arith.constant dense<0.000000e+00> : vector<8x16xf32>
    %50 = tpu.matmul %1, %49, %cst_38 {dimension_numbers = #tpu.dot_dimension_numbers<[1], [0], [0], [1], [0, 0, 1, 1], [], []>} : vector<8x32xbf16>, vector<32x16xbf16>, vector<8x16xf32> -> vector<8x16xf32>
    %51 = arith.mulf %47, %50 : vector<8x16xf32>
    %c0_39 = arith.constant 0 : index
    %c0_40 = arith.constant 0 : index
    %52 = vector.load %arg13[%c0_39, %c0_40] : memref<8x48xf32, #tpu.memory_space<vmem>>, vector<8x16xf32>
    tpu.vector_store %arg13[%c0_39, %c0_40], %51 {strides = array<i32>} : memref<8x48xf32, #tpu.memory_space<vmem>>, vector<8x16xf32>,
    %c0_41 = arith.constant 0 : index
    %c0_42 = arith.constant 0 : index
    %53 = vector.load %arg4[%c0_41, %c0_42] : memref<32x16xbf16, #tpu.memory_space<vmem>>, vector<32x16xbf16>
    %cst_43 = arith.constant dense<0.000000e+00> : vector<8x16xf32>
    %54 = tpu.matmul %3, %53, %cst_43 {dimension_numbers = #tpu.dot_dimension_numbers<[1], [0], [0], [1], [0, 0, 1, 1], [], []>} : vector<8x32xbf16>, vector<32x16xbf16>, vector<8x16xf32> -> vector<8x16xf32>
    %55 = arith.mulf %47, %54 : vector<8x16xf32>
    %c0_44 = arith.constant 0 : index
    %c16 = arith.constant 16 : index
    %56 = vector.load %arg13[%c0_44, %c16] : memref<8x48xf32, #tpu.memory_space<vmem>>, vector<8x16xf32>
    tpu.vector_store %arg13[%c0_44, %c16], %55 {strides = array<i32>} : memref<8x48xf32, #tpu.memory_space<vmem>>, vector<8x16xf32>,
    %c0_45 = arith.constant 0 : index
    %c0_46 = arith.constant 0 : index
    %57 = vector.load %arg4[%c0_45, %c0_46] : memref<32x16xbf16, #tpu.memory_space<vmem>>, vector<32x16xbf16>
    %cst_47 = arith.constant dense<0.000000e+00> : vector<8x16xf32>
    %58 = tpu.matmul %5, %57, %cst_47 {dimension_numbers = #tpu.dot_dimension_numbers<[1], [0], [0], [1], [0, 0, 1, 1], [], []>} : vector<8x32xbf16>, vector<32x16xbf16>, vector<8x16xf32> -> vector<8x16xf32>
    %59 = arith.mulf %47, %58 : vector<8x16xf32>
    %c0_48 = arith.constant 0 : index
    %c32_49 = arith.constant 32 : index
    %60 = vector.load %arg13[%c0_48, %c32_49] : memref<8x48xf32, #tpu.memory_space<vmem>>, vector<8x16xf32>
    tpu.vector_store %arg13[%c0_48, %c32_49], %59 {strides = array<i32>} : memref<8x48xf32, #tpu.memory_space<vmem>>, vector<8x16xf32>,
    return
  }
  func.func @transform_0(%arg0: i32) -> (i32, i32) {
    %c0_i32 = arith.constant 0 : i32
    %c0_i32_0 = arith.constant 0 : i32
    return %arg0, %c0_i32 : i32, i32
  }
  func.func @transform_1(%arg0: i32) -> (i32, i32) {
    %c0_i32 = arith.constant 0 : i32
    %c0_i32_0 = arith.constant 0 : i32
    return %arg0, %c0_i32 : i32, i32
  }
  func.func @transform_2(%arg0: i32) -> (i32, i32) {
    %c0_i32 = arith.constant 0 : i32
    %c0_i32_0 = arith.constant 0 : i32
    %c0_i32_1 = arith.constant 0 : i32
    return %c0_i32, %c0_i32_0 : i32, i32
  }
  func.func @transform_3(%arg0: i32) -> (i32, i32) {
    %c0_i32 = arith.constant 0 : i32
    %c0_i32_0 = arith.constant 0 : i32
    %c0_i32_1 = arith.constant 0 : i32
    return %c0_i32, %c0_i32_0 : i32, i32
  }
  func.func @transform_4(%arg0: i32) -> (i32, i32) {
    %c0_i32 = arith.constant 0 : i32
    %c0_i32_0 = arith.constant 0 : i32
    %c0_i32_1 = arith.constant 0 : i32
    return %c0_i32, %c0_i32_0 : i32, i32
  }
  func.func @transform_5(%arg0: i32) -> (i32, i32) {
    %c0_i32 = arith.constant 0 : i32
    %c0_i32_0 = arith.constant 0 : i32
    %c0_i32_1 = arith.constant 0 : i32
    return %c0_i32, %c0_i32_0 : i32, i32
  }
  func.func @transform_6(%arg0: i32) -> (i32, i32) {
    %c0_i32 = arith.constant 0 : i32
    %c0_i32_0 = arith.constant 0 : i32
    %c0_i32_1 = arith.constant 0 : i32
    return %c0_i32, %c0_i32_0 : i32, i32
  }
  func.func @transform_7(%arg0: i32) -> (i32, i32) {
    %c0_i32 = arith.constant 0 : i32
    %c0_i32_0 = arith.constant 0 : i32
    %c0_i32_1 = arith.constant 0 : i32
    return %c0_i32, %c0_i32_0 : i32, i32
  }
  func.func @transform_8(%arg0: i32) -> (i32, i32) {
    %c0_i32 = arith.constant 0 : i32
    %c0_i32_0 = arith.constant 0 : i32
    %c0_i32_1 = arith.constant 0 : i32
    return %c0_i32, %c0_i32_0 : i32, i32
  }
  func.func @transform_9(%arg0: i32) -> (i32, i32) {
    %c0_i32 = arith.constant 0 : i32
    %c0_i32_0 = arith.constant 0 : i32
    %c0_i32_1 = arith.constant 0 : i32
    return %c0_i32, %c0_i32_0 : i32, i32
  }
  func.func @transform_10(%arg0: i32) -> (i32, i32) {
    %c0_i32 = arith.constant 0 : i32
    %c0_i32_0 = arith.constant 0 : i32
    %c0_i32_1 = arith.constant 0 : i32
    return %c0_i32, %c0_i32_0 : i32, i32
  }
  func.func @transform_11(%arg0: i32) -> (i32, i32) {
    %c0_i32 = arith.constant 0 : i32
    %c0_i32_0 = arith.constant 0 : i32
    return %arg0, %c0_i32 : i32, i32
  }
  func.func @transform_12(%arg0: i32) -> (i32, i32) {
    %c0_i32 = arith.constant 0 : i32
    %c0_i32_0 = arith.constant 0 : i32
    return %arg0, %c0_i32 : i32, i32
  }
}

</mosaic_0001>

<llo_original>
// kernel: gated_equivariant_block.1
$region0: #{gated_equivariant_block.1}
  #allocation0 [shape = 'u32[]', space=smem, size = 0x4, offset = 0x4, fixed_abs, tag = 'smem constant byte address 0x4 - core index']
  #allocation1 [shape = 'u32[144,128]{1,0:T(1,128)}', space=vmem, size = 0x12000, scoped, tag = 'internal scratch']
  %s0 = inlined_call_operand.vmem [shape: f32[24,32], index: 0, kind: input, shape index: {}]
  %s1 = inlined_call_operand.vmem [shape: f32[24,96], index: 1, kind: input, shape index: {}]
  %s2 = inlined_call_operand.vmem [shape: bf16[32,32], index: 2, kind: input, shape index: {}]
  %s3 = inlined_call_operand.vmem [shape: bf16[32,16], index: 3, kind: input, shape index: {}]
  %s4 = inlined_call_operand.vmem [shape: bf16[32,32], index: 4, kind: input, shape index: {}]
  %s5 = inlined_call_operand.vmem [shape: bf16[32,32], index: 5, kind: input, shape index: {}]
  %s6 = inlined_call_operand.vmem [shape: f32[1,32], index: 6, kind: input, shape index: {}]
  %s7 = inlined_call_operand.vmem [shape: bf16[32,16], index: 7, kind: input, shape index: {}]
  %s8 = inlined_call_operand.vmem [shape: f32[1,16], index: 8, kind: input, shape index: {}]
  %s9 = inlined_call_operand.vmem [shape: bf16[32,16], index: 9, kind: input, shape index: {}]
  %s10 = inlined_call_operand.vmem [shape: f32[1,16], index: 10, kind: input, shape index: {}]
  %s11 = inlined_call_operand.vmem [shape: f32[24,16], index: 11, kind: output, shape index: {0}]
  %s12 = inlined_call_operand.vmem [shape: f32[24,48], index: 12, kind: output, shape index: {1}]
  %13 = xla_tuple %s11, %s12
  %s14 = sld [smem:[#allocation0]]
  $region85: #{gated_equivariant_block.1} parent=0
    _
  %s16 = ssub.s32 1, %s14
  %s17 = scalar_select 0, %s16, %s14
  loop: start=0, step=1, limit=5
  $region2: #{gated_equivariant_block.1} parent=0 // loop_pre_header
    _
  $region3: #{gated_equivariant_block.1} parent=0 // loop_header
    %s19 = sphi 0, %s23
    %p20 = scmp.ge.s32.totalorder %s19, 5
    %s29 = sphi 0, %s31
    %s32 = sphi 0, %s29
    %s33 = sphi 0, %s32
    %s49 = sphi 0, %s33
    %s55 = sphi 0, %s57
    %s58 = sphi 0, %s55
    %s59 = sphi 0, %s58
    %s75 = sphi 0, %s59
    %s79 = sphi 0, %s79
    %s81 = sphi 0, %s79
    %s82 = sphi 0, %s81
    %s96 = sphi 0, %s82
    %s100 = sphi 0, %s100
    %s102 = sphi 0, %s100
    %s103 = sphi 0, %s102
    %s117 = sphi 0, %s103
    %s121 = sphi 0, %s121
    %s123 = sphi 0, %s121
    %s124 = sphi 0, %s123
    %s138 = sphi 0, %s124
    %s142 = sphi 0, %s142
    %s144 = sphi 0, %s142
    %s145 = sphi 0, %s144
    %s159 = sphi 0, %s145
    %s163 = sphi 0, %s163
    %s165 = sphi 0, %s163
    %s166 = sphi 0, %s165
    %s180 = sphi 0, %s166
    %s184 = sphi 0, %s184
    %s186 = sphi 0, %s184
    %s187 = sphi 0, %s186
    %s201 = sphi 0, %s187
    %s205 = sphi 0, %s205
    %s207 = sphi 0, %s205
    %s208 = sphi 0, %s207
    %s222 = sphi 0, %s208
    %s226 = sphi 0, %s226
    %s228 = sphi 0, %s226
    %s229 = sphi 0, %s228
    %s243 = sphi 0, %s229
    %s247 = sphi 0, %s247
    %s249 = sphi 0, %s247
    %s250 = sphi 0, %s249
    %s264 = sphi 0, %s250
    %s270 = sphi 0, %s272
    %s273 = sphi 0, %s270
    %s274 = sphi 0, %s273
    %s290 = sphi 0, %s274
    %s296 = sphi 0, %s298
    %s299 = sphi 0, %s296
    %s300 = sphi 0, %s299
    %s316 = sphi 0, %s300
  $region4: #{gated_equivariant_block.1} parent=0 // loop_header_branch
    %22 = sbr.rel (%p20) target = $region8
  $region5: #{gated_equivariant_block.1} parent=0 // loop_body
    %s24 = ssub.s32 %s19, 1
    %s25 = ssub.s32 %s19, 2
    %s26 = sadd.s32 %s19, 1
    %s27 = ssub.s32 %s19, %s26
    %p28 = scmp.eq.s32.totalorder %s27, 0
    %s30 = sadd.s32 %s29, 1
    %s31 = scalar_select %p28, %s29, %s30
    %p34 = pneg %p28
    %p35 = scmp.eq.s32.totalorder %s19, 2
    %p36 = por %p34, %p35
    %p37 = scmp.ne.s32.totalorder %s29, %s32
    %p38 = scmp.eq.s32.totalorder %s19, 0
    %p39 = por %p37, %p38
    %p40 = scmp.ne.s32.totalorder %s29, %s32
    %p41 = scmp.eq.s32.totalorder %s24, 2
    %p42 = por %p40, %p41
    %p43 = scmp.ne.s32.totalorder %s32, %s33
    %p44 = scmp.eq.s32.totalorder %s24, 0
    %p45 = por %p43, %p44
    %p46 = scmp.ne.s32.totalorder %s32, %s33
    %p47 = scmp.eq.s32.totalorder %s25, 2
    %p48 = por %p46, %p47
    %p50 = scmp.ne.s32.totalorder %s33, %s49
    %p51 = scmp.eq.s32.totalorder %s25, 0
    %p52 = por %p50, %p51
    %s53 = ssub.s32 %s19, %s26
    %p54 = scmp.eq.s32.totalorder %s53, 0
    %s56 = sadd.s32 %s55, 1
    %s57 = scalar_select %p54, %s55, %s56
    %p60 = pneg %p54
    %p61 = scmp.eq.s32.totalorder %s19, 2
    %p62 = por %p60, %p61
    %p63 = scmp.ne.s32.totalorder %s55, %s58
    %p64 = scmp.eq.s32.totalorder %s19, 0
    %p65 = por %p63, %p64
    %p66 = scmp.ne.s32.totalorder %s55, %s58
    %p67 = scmp.eq.s32.totalorder %s24, 2
    %p68 = por %p66, %p67
    %p69 = scmp.ne.s32.totalorder %s58, %s59
    %p70 = scmp.eq.s32.totalorder %s24, 0
    %p71 = por %p69, %p70
    %p72 = scmp.ne.s32.totalorder %s58, %s59
    %p73 = scmp.eq.s32.totalorder %s25, 2
    %p74 = por %p72, %p73
    %p76 = scmp.ne.s32.totalorder %s59, %s75
    %p77 = scmp.eq.s32.totalorder %s25, 0
    %p78 = por %p76, %p77
    %s80 = sadd.s32 %s79, 1
    %p83 = scmp.eq.s32.totalorder %s19, 2
    %p84 = scmp.ne.s32.totalorder %s79, %s81
    %p85 = scmp.eq.s32.totalorder %s19, 0
    %p86 = por %p84, %p85
    %p87 = scmp.ne.s32.totalorder %s79, %s81
    %p88 = scmp.eq.s32.totalorder %s24, 2
    %p89 = por %p87, %p88
    %p90 = scmp.ne.s32.totalorder %s81, %s82
    %p91 = scmp.eq.s32.totalorder %s24, 0
    %p92 = por %p90, %p91
    %p93 = scmp.ne.s32.totalorder %s81, %s82
    %p94 = scmp.eq.s32.totalorder %s25, 2
    %p95 = por %p93, %p94
    %p97 = scmp.ne.s32.totalorder %s82, %s96
    %p98 = scmp.eq.s32.totalorder %s25, 0
    %p99 = por %p97, %p98
    %s101 = sadd.s32 %s100, 1
    %p104 = scmp.eq.s32.totalorder %s19, 2
    %p105 = scmp.ne.s32.totalorder %s100, %s102
    %p106 = scmp.eq.s32.totalorder %s19, 0
    %p107 = por %p105, %p106
    %p108 = scmp.ne.s32.totalorder %s100, %s102
    %p109 = scmp.eq.s32.totalorder %s24, 2
    %p110 = por %p108, %p109
    %p111 = scmp.ne.s32.totalorder %s102, %s103
    %p112 = scmp.eq.s32.totalorder %s24, 0
    %p113 = por %p111, %p112
    %p114 = scmp.ne.s32.totalorder %s102, %s103
    %p115 = scmp.eq.s32.totalorder %s25, 2
    %p116 = por %p114, %p115
    %p118 = scmp.ne.s32.totalorder %s103, %s117
    %p119 = scmp.eq.s32.totalorder %s25, 0
    %p120 = por %p118, %p119
    %s122 = sadd.s32 %s121, 1
    %p125 = scmp.eq.s32.totalorder %s19, 2
    %p126 = scmp.ne.s32.totalorder %s121, %s123
    %p127 = scmp.eq.s32.totalorder %s19, 0
    %p128 = por %p126, %p127
    %p129 = scmp.ne.s32.totalorder %s121, %s123
    %p130 = scmp.eq.s32.totalorder %s24, 2
    %p131 = por %p129, %p130
    %p132 = scmp.ne.s32.totalorder %s123, %s124
    %p133 = scmp.eq.s32.totalorder %s24, 0
    %p134 = por %p132, %p133
    %p135 = scmp.ne.s32.totalorder %s123, %s124
    %p136 = scmp.eq.s32.totalorder %s25, 2
    %p137 = por %p135, %p136
    %p139 = scmp.ne.s32.totalorder %s124, %s138
    %p140 = scmp.eq.s32.totalorder %s25, 0
    %p141 = por %p139, %p140
    %s143 = sadd.s32 %s142, 1
    %p146 = scmp.eq.s32.totalorder %s19, 2
    %p147 = scmp.ne.s32.totalorder %s142, %s144
    %p148 = scmp.eq.s32.totalorder %s19, 0
    %p149 = por %p147, %p148
    %p150 = scmp.ne.s32.totalorder %s142, %s144
    %p151 = scmp.eq.s32.totalorder %s24, 2
    %p152 = por %p150, %p151
    %p153 = scmp.ne.s32.totalorder %s144, %s145
    %p154 = scmp.eq.s32.totalorder %s24, 0
    %p155 = por %p153, %p154
    %p156 = scmp.ne.s32.totalorder %s144, %s145
    %p157 = scmp.eq.s32.totalorder %s25, 2
    %p158 = por %p156, %p157
    %p160 = scmp.ne.s32.totalorder %s145, %s159
    %p161 = scmp.eq.s32.totalorder %s25, 0
    %p162 = por %p160, %p161
    %s164 = sadd.s32 %s163, 1
    %p167 = scmp.eq.s32.totalorder %s19, 2
    %p168 = scmp.ne.s32.totalorder %s163, %s165
    %p169 = scmp.eq.s32.totalorder %s19, 0
    %p170 = por %p168, %p169
    %p171 = scmp.ne.s32.totalorder %s163, %s165
    %p172 = scmp.eq.s32.totalorder %s24, 2
    %p173 = por %p171, %p172
    %p174 = scmp.ne.s32.totalorder %s165, %s166
    %p175 = scmp.eq.s32.totalorder %s24, 0
    %p176 = por %p174, %p175
    %p177 = scmp.ne.s32.totalorder %s165, %s166
    %p178 = scmp.eq.s32.totalorder %s25, 2
    %p179 = por %p177, %p178
    %p181 = scmp.ne.s32.totalorder %s166, %s180
    %p182 = scmp.eq.s32.totalorder %s25, 0
    %p183 = por %p181, %p182
    %s185 = sadd.s32 %s184, 1
    %p188 = scmp.eq.s32.totalorder %s19, 2
    %p189 = scmp.ne.s32.totalorder %s184, %s186
    %p190 = scmp.eq.s32.totalorder %s19, 0
    %p191 = por %p189, %p190
    %p192 = scmp.ne.s32.totalorder %s184, %s186
    %p193 = scmp.eq.s32.totalorder %s24, 2
    %p194 = por %p192, %p193
    %p195 = scmp.ne.s32.totalorder %s186, %s187
    %p196 = scmp.eq.s32.totalorder %s24, 0
    %p197 = por %p195, %p196
    %p198 = scmp.ne.s32.totalorder %s186, %s187
    %p199 = scmp.eq.s32.totalorder %s25, 2
    %p200 = por %p198, %p199
    %p202 = scmp.ne.s32.totalorder %s187, %s201
    %p203 = scmp.eq.s32.totalorder %s25, 0
    %p204 = por %p202, %p203
    %s206 = sadd.s32 %s205, 1
    %p209 = scmp.eq.s32.totalorder %s19, 2
    %p210 = scmp.ne.s32.totalorder %s205, %s207
    %p211 = scmp.eq.s32.totalorder %s19, 0
    %p212 = por %p210, %p211
    %p213 = scmp.ne.s32.totalorder %s205, %s207
    %p214 = scmp.eq.s32.totalorder %s24, 2
    %p215 = por %p213, %p214
    %p216 = scmp.ne.s32.totalorder %s207, %s208
    %p217 = scmp.eq.s32.totalorder %s24, 0
    %p218 = por %p216, %p217
    %p219 = scmp.ne.s32.totalorder %s207, %s208
    %p220 = scmp.eq.s32.totalorder %s25, 2
    %p221 = por %p219, %p220
    %p223 = scmp.ne.s32.totalorder %s208, %s222
    %p224 = scmp.eq.s32.totalorder %s25, 0
    %p225 = por %p223, %p224
    %s227 = sadd.s32 %s226, 1
    %p230 = scmp.eq.s32.totalorder %s19, 2
    %p231 = scmp.ne.s32.totalorder %s226, %s228
    %p232 = scmp.eq.s32.totalorder %s19, 0
    %p233 = por %p231, %p232
    %p234 = scmp.ne.s32.totalorder %s226, %s228
    %p235 = scmp.eq.s32.totalorder %s24, 2
    %p236 = por %p234, %p235
    %p237 = scmp.ne.s32.totalorder %s228, %s229
    %p238 = scmp.eq.s32.totalorder %s24, 0
    %p239 = por %p237, %p238
    %p240 = scmp.ne.s32.totalorder %s228, %s229
    %p241 = scmp.eq.s32.totalorder %s25, 2
    %p242 = por %p240, %p241
    %p244 = scmp.ne.s32.totalorder %s229, %s243
    %p245 = scmp.eq.s32.totalorder %s25, 0
    %p246 = por %p244, %p245
    %s248 = sadd.s32 %s247, 1
    %p251 = scmp.eq.s32.totalorder %s19, 2
    %p252 = scmp.ne.s32.totalorder %s247, %s249
    %p253 = scmp.eq.s32.totalorder %s19, 0
    %p254 = por %p252, %p253
    %p255 = scmp.ne.s32.totalorder %s247, %s249
    %p256 = scmp.eq.s32.totalorder %s24, 2
    %p257 = por %p255, %p256
    %p258 = scmp.ne.s32.totalorder %s249, %s250
    %p259 = scmp.eq.s32.totalorder %s24, 0
    %p260 = por %p258, %p259
    %p261 = scmp.ne.s32.totalorder %s249, %s250
    %p262 = scmp.eq.s32.totalorder %s25, 2
    %p263 = por %p261, %p262
    %p265 = scmp.ne.s32.totalorder %s250, %s264
    %p266 = scmp.eq.s32.totalorder %s25, 0
    %p267 = por %p265, %p266
    %s268 = ssub.s32 %s19, %s26
    %p269 = scmp.eq.s32.totalorder %s268, 0
    %s271 = sadd.s32 %s270, 1
    %s272 = scalar_select %p269, %s270, %s271
    %p275 = pneg %p269
    %p276 = scmp.eq.s32.totalorder %s19, 2
    %p277 = por %p275, %p276
    %p278 = scmp.ne.s32.totalorder %s270, %s273
    %p279 = scmp.eq.s32.totalorder %s19, 0
    %p280 = por %p278, %p279
    %p281 = scmp.ne.s32.totalorder %s270, %s273
    %p282 = scmp.eq.s32.totalorder %s24, 2
    %p283 = por %p281, %p282
    %p284 = scmp.ne.s32.totalorder %s273, %s274
    %p285 = scmp.eq.s32.totalorder %s24, 0
    %p286 = por %p284, %p285
    %p287 = scmp.ne.s32.totalorder %s273, %s274
    %p288 = scmp.eq.s32.totalorder %s25, 2
    %p289 = por %p287, %p288
    %p291 = scmp.ne.s32.totalorder %s274, %s290
    %p292 = scmp.eq.s32.totalorder %s25, 0
    %p293 = por %p291, %p292
    %s294 = ssub.s32 %s19, %s26
    %p295 = scmp.eq.s32.totalorder %s294, 0
    %s297 = sadd.s32 %s296, 1
    %s298 = scalar_select %p295, %s296, %s297
    %p301 = pneg %p295
    %p302 = scmp.eq.s32.totalorder %s19, 2
    %p303 = por %p301, %p302
    %p304 = scmp.ne.s32.totalorder %s296, %s299
    %p305 = scmp.eq.s32.totalorder %s19, 0
    %p306 = por %p304, %p305
    %p307 = scmp.ne.s32.totalorder %s296, %s299
    %p308 = scmp.eq.s32.totalorder %s24, 2
    %p309 = por %p307, %p308
    %p310 = scmp.ne.s32.totalorder %s299, %s300
    %p311 = scmp.eq.s32.totalorder %s24, 0
    %p312 = por %p310, %p311
    %p313 = scmp.ne.s32.totalorder %s299, %s300
    %p314 = scmp.eq.s32.totalorder %s25, 2
    %p315 = por %p313, %p314
    %p317 = scmp.ne.s32.totalorder %s300, %s316
    %p318 = scmp.eq.s32.totalorder %s25, 0
    %p319 = por %p317, %p318
    %p320 = scmp.le.s32.totalorder 1, %s19
    %p321 = scmp.lt.s32.totalorder %s19, 4
    %p322 = pnand %p320, %p321
    %p323 = pneg %p322
    // Predicated region
    $region9: #{gated_equivariant_block.1} parent=5 // pred_check
      _
    $region10: #{gated_equivariant_block.1} parent=5 // pred_check_branch
      %325 = sbr.rel (%p322) target = $region12
    $region11: #{gated_equivariant_block.1} parent=5 // pred_region
      %s326 = ssub.s32 %s19, 1
      // Predicated region
      $region13: #{gated_equivariant_block.1} parent=11 // pred_check
        %p327 = pneg %p92
      $region14: #{gated_equivariant_block.1} parent=11 // pred_check_branch
        %329 = sbr.rel (%p327) target = $region16
      $region15: #{gated_equivariant_block.1} parent=11 // pred_region
        _
      $region16: #{gated_equivariant_block.1} parent=11 // pred_fallthru
        _
      // Predicated region
      $region17: #{gated_equivariant_block.1} parent=11 // pred_check
        %p330 = pneg %p113
      $region18: #{gated_equivariant_block.1} parent=11 // pred_check_branch
        %332 = sbr.rel (%p330) target = $region20
      $region19: #{gated_equivariant_block.1} parent=11 // pred_region
        _
      $region20: #{gated_equivariant_block.1} parent=11 // pred_fallthru
        _
      // Predicated region
      $region21: #{gated_equivariant_block.1} parent=11 // pred_check
        %p333 = pneg %p134
      $region22: #{gated_equivariant_block.1} parent=11 // pred_check_branch
        %335 = sbr.rel (%p333) target = $region24
      $region23: #{gated_equivariant_block.1} parent=11 // pred_region
        _
      $region24: #{gated_equivariant_block.1} parent=11 // pred_fallthru
        _
      // Predicated region
      $region25: #{gated_equivariant_block.1} parent=11 // pred_check
        %p336 = pneg %p155
      $region26: #{gated_equivariant_block.1} parent=11 // pred_check_branch
        %338 = sbr.rel (%p336) target = $region28
      $region27: #{gated_equivariant_block.1} parent=11 // pred_region
        _
      $region28: #{gated_equivariant_block.1} parent=11 // pred_fallthru
        _
      // Predicated region
      $region29: #{gated_equivariant_block.1} parent=11 // pred_check
        %p339 = pneg %p176
      $region30: #{gated_equivariant_block.1} parent=11 // pred_check_branch
        %341 = sbr.rel (%p339) target = $region32
      $region31: #{gated_equivariant_block.1} parent=11 // pred_region
        _
      $region32: #{gated_equivariant_block.1} parent=11 // pred_fallthru
        _
      // Predicated region
      $region33: #{gated_equivariant_block.1} parent=11 // pred_check
        %p342 = pneg %p197
      $region34: #{gated_equivariant_block.1} parent=11 // pred_check_branch
        %344 = sbr.rel (%p342) target = $region36
      $region35: #{gated_equivariant_block.1} parent=11 // pred_region
        _
      $region36: #{gated_equivariant_block.1} parent=11 // pred_fallthru
        _
      // Predicated region
      $region37: #{gated_equivariant_block.1} parent=11 // pred_check
        %p345 = pneg %p218
      $region38: #{gated_equivariant_block.1} parent=11 // pred_check_branch
        %347 = sbr.rel (%p345) target = $region40
      $region39: #{gated_equivariant_block.1} parent=11 // pred_region
        _
      $region40: #{gated_equivariant_block.1} parent=11 // pred_fallthru
        _
      // Predicated region
      $region41: #{gated_equivariant_block.1} parent=11 // pred_check
        %p348 = pneg %p239
      $region42: #{gated_equivariant_block.1} parent=11 // pred_check_branch
        %350 = sbr.rel (%p348) target = $region44
      $region43: #{gated_equivariant_block.1} parent=11 // pred_region
        _
      $region44: #{gated_equivariant_block.1} parent=11 // pred_fallthru
        _
      // Predicated region
      $region45: #{gated_equivariant_block.1} parent=11 // pred_check
        %p351 = pneg %p260
      $region46: #{gated_equivariant_block.1} parent=11 // pred_check_branch
        %353 = sbr.rel (%p351) target = $region48
      $region47: #{gated_equivariant_block.1} parent=11 // pred_region
        _
      $region48: #{gated_equivariant_block.1} parent=11 // pred_fallthru
        _
    $region12: #{gated_equivariant_block.1} parent=5 // pred_fallthru
      _
    %p354 = scmp.lt.s32.totalorder %s19, 3
    // Predicated region
    $region49: #{gated_equivariant_block.1} parent=5 // pred_check
      %p355 = pneg %p354
    $region50: #{gated_equivariant_block.1} parent=5 // pred_check_branch
      %357 = sbr.rel (%p355) target = $region52
    $region51: #{gated_equivariant_block.1} parent=5 // pred_region
      // Predicated region
      $region53: #{gated_equivariant_block.1} parent=51 // pred_check
        %p358 = pneg %p39
      $region54: #{gated_equivariant_block.1} parent=51 // pred_check_branch
        %360 = sbr.rel (%p358) target = $region56
      $region55: #{gated_equivariant_block.1} parent=51 // pred_region
        %p361 = scmp.lt.s32.totalorder %s19, 2
        %s362 = scalar_select %p361, %s19, 2
        %s363 = smul.addr %s362, 8
        %s364 = scalar_lea.vmem %s0, %s363
      $region56: #{gated_equivariant_block.1} parent=51 // pred_fallthru
        _
      // Predicated region
      $region57: #{gated_equivariant_block.1} parent=51 // pred_check
        %p365 = pneg %p65
      $region58: #{gated_equivariant_block.1} parent=51 // pred_check_branch
        %367 = sbr.rel (%p365) target = $region60
      $region59: #{gated_equivariant_block.1} parent=51 // pred_region
        %p368 = scmp.lt.s32.totalorder %s19, 2
        %s369 = scalar_select %p368, %s19, 2
        %s370 = smul.addr %s369, 8
        %s371 = scalar_lea.vmem %s1, %s370
      $region60: #{gated_equivariant_block.1} parent=51 // pred_fallthru
        _
    $region52: #{gated_equivariant_block.1} parent=5 // pred_fallthru
      _
    %p372 = scmp.le.s32.totalorder 1, %s19
    %p373 = scmp.lt.s32.totalorder %s19, 4
    %p374 = pnand %p372, %p373
    %p375 = pneg %p374
    // Predicated region
    $region61: #{gated_equivariant_block.1} parent=5 // pred_check
      _
    $region62: #{gated_equivariant_block.1} parent=5 // pred_check_branch
      %377 = sbr.rel (%p374) target = $region64
    $region63: #{gated_equivariant_block.1} parent=5 // pred_region
      %s378 = ssub.s32 %s19, 1
      %p379 = scmp.lt.s32.totalorder %s24, 2
      %s380 = scalar_select %p379, %s24, 2
      %s381 = smul.addr %s380, 8
      %s382 = scalar_lea.vmem %s0, %s381
      %p383 = pneg %p45
      %p384 = pneg %p42
      %p385 = scmp.lt.s32.totalorder %s24, 2
      %s386 = scalar_select %p385, %s24, 2
      %s387 = smul.addr %s386, 8
      %s388 = scalar_lea.vmem %s1, %s387
      %p389 = pneg %p71
      %p390 = pneg %p68
      %p391 = pneg %p92
      %p392 = pneg %p89
      %p393 = pneg %p113
      %p394 = pneg %p110
      %p395 = pneg %p134
      %p396 = pneg %p131
      %p397 = pneg %p155
      %p398 = pneg %p152
      %p399 = pneg %p176
      %p400 = pneg %p173
      %p401 = pneg %p197
      %p402 = pneg %p194
      %p403 = pneg %p218
      %p404 = pneg %p215
      %p405 = pneg %p239
      %p406 = pneg %p236
      %p407 = pneg %p260
      %p408 = pneg %p257
      %p409 = pneg %p286
      %p410 = pneg %p283
      %p411 = scmp.lt.s32.totalorder %s24, 2
      %s412 = scalar_select %p411, %s24, 2
      %s413 = smul.addr %s412, 8
      %s414 = scalar_lea.vmem %s11, %s413
      %p415 = pneg %p312
      %p416 = pneg %p309
      %p417 = scmp.lt.s32.totalorder %s24, 2
      %s418 = scalar_select %p417, %s24, 2
      %s419 = smul.addr %s418, 8
      %s420 = scalar_lea.vmem %s12, %s419
      %p421 = scmp.lt.s32.totalorder %s24, 2
      %s422 = scalar_select %p421, %s24, 2
      %s423 = smul.addr %s422, 8
      %s424 = scalar_lea.vmem %s0, %s423
      %p425 = scmp.lt.s32.totalorder %s24, 2
      %s426 = scalar_select %p425, %s24, 2
      %s427 = smul.addr %s426, 8
      %s428 = scalar_lea.vmem %s1, %s427
      %p429 = scmp.lt.s32.totalorder %s24, 2
      %s430 = scalar_select %p429, %s24, 2
      %s431 = smul.addr %s430, 8
      %s432 = scalar_lea.vmem %s11, %s431
      %p433 = scmp.lt.s32.totalorder %s24, 2
      %s434 = scalar_select %p433, %s24, 2
      %s435 = smul.addr %s434, 8
      %s436 = scalar_lea.vmem %s12, %s435
      %v438 = vld [vmem:[%s428] sm:$0xff]
      %v439 = vpack.c.bf16 %v438, %v438
      %v440 = vld [vmem:[%s2] sm:$0xf]
      %v441 = vld [vmem:[%s2 + $0x4] sm:$0xf]
      %v442 = vld [vmem:[%s2 + $0x8] sm:$0xf]
      %v443 = vld [vmem:[%s2 + $0xc] sm:$0xf]
      %v448 = vunpack.c.l.b16 %v440
      %v449 = vunpack.c.l.b16 %v441
      %v450 = vunpack.c.l.b16 %v442
      %v451 = vunpack.c.l.b16 %v443
      %v452 = vpack.c.b16 %v449, %v448
      %v453 = vpack.c.b16 %v451, %v450
      %vm456 = vcmask 261120
      %v458 = vsel %vm456, %v439, 0
      %460 = vmatprep.subr.bf16.mxu0 0
      %461 = vmatpush1.bf16.msra.mxu0 %v452
      %462 = vmatprep.subr.bf16.mxu0 0
      %463 = vmatpush1.bf16.msra.mxu0 %v453
      %464 = vmatprep.subr.bf16.mxu0 0
      %465 = vmatpush1.bf16.msra.mxu0 0
      %466 = vmatprep.subr.bf16.mxu0 0
      %467 = vmatpush1.bf16.msra.mxu0 0
      %468 = vmatprep.subr.bf16.mxu0 0
      %469 = vmatpush1.bf16.msra.mxu0 0
      %470 = vmatprep.subr.bf16.mxu0 0
      %471 = vmatpush1.bf16.msra.mxu0 0
      %472 = vmatprep.subr.bf16.mxu0 0
      %473 = vmatpush1.bf16.msra.mxu0 0
      %474 = vmatprep.subr.bf16.mxu0 0
      %475 = vmatpush1.bf16.msra.mxu0 0
      %476 = vmatprep.subr.bf16.mxu0 0
      %477 = vmatpush1.bf16.msra.mxu0 0
      %478 = vmatprep.subr.bf16.mxu0 0
      %479 = vmatpush1.bf16.msra.mxu0 0
      %480 = vmatprep.subr.bf16.mxu0 0
      %481 = vmatpush1.bf16.msra.mxu0 0
      %482 = vmatprep.subr.bf16.mxu0 0
      %483 = vmatpush1.bf16.msra.mxu0 0
      %484 = vmatprep.subr.bf16.mxu0 0
      %485 = vmatpush1.bf16.msra.mxu0 0
      %486 = vmatprep.subr.bf16.mxu0 0
      %487 = vmatpush1.bf16.msra.mxu0 0
      %488 = vmatprep.subr.bf16.mxu0 0
      %489 = vmatpush1.bf16.msra.mxu0 0
      %490 = vmatprep.subr.bf16.mxu0 0
      %491 = vmatpush1.bf16.msra.mxu0 0
      %492 = vmatprep.mubr.bf16.mxu0 0
      %493 = vmatmul.mubr.bf16.gmra.mrb[0].mxu0 %v458
      %v494 = vpop.f32.mrb[0].mxu0
      %v495 = vadd.f32 0.0, %v494
      %v496 = vpop.f32.mrb[0].mxu0
      %v497 = vpop.f32.mrb[0].mxu0
      %v498 = vpop.f32.mrb[0].mxu0
      %499 = vdwg.mxu0
      %501 = vrot.lane.b32.xlu0 %v439, 96
      %v502 = vpop.permute.xlu0 %501
      %v504 = vsel %vm456, %v502, 0
      %506 = vmatprep.subr.bf16.mxu0 0
      %507 = vmatpush1.bf16.msra.mxu0 %v452
      %508 = vmatprep.subr.bf16.mxu0 0
      %509 = vmatpush1.bf16.msra.mxu0 %v453
      %510 = vmatprep.subr.bf16.mxu0 0
      %511 = vmatpush1.bf16.msra.mxu0 0
      %512 = vmatprep.subr.bf16.mxu0 0
      %513 = vmatpush1.bf16.msra.mxu0 0
      %514 = vmatprep.subr.bf16.mxu0 0
      %515 = vmatpush1.bf16.msra.mxu0 0
      %516 = vmatprep.subr.bf16.mxu0 0
      %517 = vmatpush1.bf16.msra.mxu0 0
      %518 = vmatprep.subr.bf16.mxu0 0
      %519 = vmatpush1.bf16.msra.mxu0 0
      %520 = vmatprep.subr.bf16.mxu0 0
      %521 = vmatpush1.bf16.msra.mxu0 0
      %522 = vmatprep.subr.bf16.mxu0 0
      %523 = vmatpush1.bf16.msra.mxu0 0
      %524 = vmatprep.subr.bf16.mxu0 0
      %525 = vmatpush1.bf16.msra.mxu0 0
      %526 = vmatprep.subr.bf16.mxu0 0
      %527 = vmatpush1.bf16.msra.mxu0 0
      %528 = vmatprep.subr.bf16.mxu0 0
      %529 = vmatpush1.bf16.msra.mxu0 0
      %530 = vmatprep.subr.bf16.mxu0 0
      %531 = vmatpush1.bf16.msra.mxu0 0
      %532 = vmatprep.subr.bf16.mxu0 0
      %533 = vmatpush1.bf16.msra.mxu0 0
      %534 = vmatprep.subr.bf16.mxu0 0
      %535 = vmatpush1.bf16.msra.mxu0 0
      %536 = vmatprep.subr.bf16.mxu0 0
      %537 = vmatpush1.bf16.msra.mxu0 0
      %538 = vmatprep.mubr.bf16.mxu0 0
      %539 = vmatmul.mubr.bf16.gmra.mrb[0].mxu0 %v504
      %v540 = vpop.f32.mrb[0].mxu0
      %v541 = vadd.f32 0.0, %v540
      %v542 = vpop.f32.mrb[0].mxu0
      %v543 = vpop.f32.mrb[0].mxu0
      %v544 = vpop.f32.mrb[0].mxu0
      %545 = vdwg.mxu0
      %546 = vrot.lane.b32.xlu0 %v439, 64
      %v547 = vpop.permute.xlu0 %546
      %v549 = vsel %vm456, %v547, 0
      %551 = vmatprep.subr.bf16.mxu0 0
      %552 = vmatpush1.bf16.msra.mxu0 %v452
      %553 = vmatprep.subr.bf16.mxu0 0
      %554 = vmatpush1.bf16.msra.mxu0 %v453
      %555 = vmatprep.subr.bf16.mxu0 0
      %556 = vmatpush1.bf16.msra.mxu0 0
      %557 = vmatprep.subr.bf16.mxu0 0
      %558 = vmatpush1.bf16.msra.mxu0 0
      %559 = vmatprep.subr.bf16.mxu0 0
      %560 = vmatpush1.bf16.msra.mxu0 0
      %561 = vmatprep.subr.bf16.mxu0 0
      %562 = vmatpush1.bf16.msra.mxu0 0
      %563 = vmatprep.subr.bf16.mxu0 0
      %564 = vmatpush1.bf16.msra.mxu0 0
      %565 = vmatprep.subr.bf16.mxu0 0
      %566 = vmatpush1.bf16.msra.mxu0 0
      %567 = vmatprep.subr.bf16.mxu0 0
      %568 = vmatpush1.bf16.msra.mxu0 0
      %569 = vmatprep.subr.bf16.mxu0 0
      %570 = vmatpush1.bf16.msra.mxu0 0
      %571 = vmatprep.subr.bf16.mxu0 0
      %572 = vmatpush1.bf16.msra.mxu0 0
      %573 = vmatprep.subr.bf16.mxu0 0
      %574 = vmatpush1.bf16.msra.mxu0 0
      %575 = vmatprep.subr.bf16.mxu0 0
      %576 = vmatpush1.bf16.msra.mxu0 0
      %577 = vmatprep.subr.bf16.mxu0 0
      %578 = vmatpush1.bf16.msra.mxu0 0
      %579 = vmatprep.subr.bf16.mxu0 0
      %580 = vmatpush1.bf16.msra.mxu0 0
      %581 = vmatprep.subr.bf16.mxu0 0
      %582 = vmatpush1.bf16.msra.mxu0 0
      %583 = vmatprep.mubr.bf16.mxu0 0
      %584 = vmatmul.mubr.bf16.gmra.mrb[0].mxu0 %v549
      %v585 = vpop.f32.mrb[0].mxu0
      %v586 = vadd.f32 0.0, %v585
      %v587 = vpop.f32.mrb[0].mxu0
      %v588 = vpop.f32.mrb[0].mxu0
      %v589 = vpop.f32.mrb[0].mxu0
      %590 = vdwg.mxu0
      %v591 = vmul.f32 %v495, %v495
      %v592 = vmul.f32 %v541, %v541
      %v593 = vadd.f32 %v591, %v592
      %v594 = vmul.f32 %v586, %v586
      %v595 = vadd.f32 %v593, %v594
      %v596 = vrsqrt.pop %v595
      %v597 = vmul.f32 %v595, %v596
      %vm598 = vcmp.eq.f32.partialorder %v595, inf
      %v599 = vsel %vm598, %v595, %v597
      %vm600 = vcmp.eq.f32.partialorder %v595, 0.0
      %v601 = vand.u32 %v595, 2147483648
      %v602 = vsel %vm600, %v601, %v599
      %v603 = vld [vmem:[%s424] sm:$0xff]
      %v604 = vpack.c.bf16 %v603, %v603
      %v605 = vld [vmem:[%s4] sm:$0xf]
      %v606 = vld [vmem:[%s4 + $0x4] sm:$0xf]
      %v607 = vld [vmem:[%s4 + $0x8] sm:$0xf]
      %v608 = vld [vmem:[%s4 + $0xc] sm:$0xf]
      %v609 = vpack.c.bf16 %v602, %v602
      %v610 = vld [vmem:[%s5] sm:$0xf]
      %v611 = vld [vmem:[%s5 + $0x4] sm:$0xf]
      %v612 = vld [vmem:[%s5 + $0x8] sm:$0xf]
      %v613 = vld [vmem:[%s5 + $0xc] sm:$0xf]
      %v618 = vunpack.c.l.b16 %v610
      %v619 = vunpack.c.l.b16 %v611
      %v620 = vunpack.c.l.b16 %v612
      %v621 = vunpack.c.l.b16 %v613
      %v622 = vpack.c.b16 %v619, %v618
      %v623 = vpack.c.b16 %v621, %v620
      %v627 = vsel %vm456, %v609, 0
      %629 = vmatprep.subr.bf16.mxu0 0
      %630 = vmatpush1.bf16.msra.mxu0 %v622
      %631 = vmatprep.subr.bf16.mxu0 0
      %632 = vmatpush1.bf16.msra.mxu0 %v623
      %633 = vmatprep.subr.bf16.mxu0 0
      %634 = vmatpush1.bf16.msra.mxu0 0
      %635 = vmatprep.subr.bf16.mxu0 0
      %636 = vmatpush1.bf16.msra.mxu0 0
      %637 = vmatprep.subr.bf16.mxu0 0
      %638 = vmatpush1.bf16.msra.mxu0 0
      %639 = vmatprep.subr.bf16.mxu0 0
      %640 = vmatpush1.bf16.msra.mxu0 0
      %641 = vmatprep.subr.bf16.mxu0 0
      %642 = vmatpush1.bf16.msra.mxu0 0
      %643 = vmatprep.subr.bf16.mxu0 0
      %644 = vmatpush1.bf16.msra.mxu0 0
      %645 = vmatprep.subr.bf16.mxu0 0
      %646 = vmatpush1.bf16.msra.mxu0 0
      %647 = vmatprep.subr.bf16.mxu0 0
      %648 = vmatpush1.bf16.msra.mxu0 0
      %649 = vmatprep.subr.bf16.mxu0 0
      %650 = vmatpush1.bf16.msra.mxu0 0
      %651 = vmatprep.subr.bf16.mxu0 0
      %652 = vmatpush1.bf16.msra.mxu0 0
      %653 = vmatprep.subr.bf16.mxu0 0
      %654 = vmatpush1.bf16.msra.mxu0 0
      %655 = vmatprep.subr.bf16.mxu0 0
      %656 = vmatpush1.bf16.msra.mxu0 0
      %657 = vmatprep.subr.bf16.mxu0 0
      %658 = vmatpush1.bf16.msra.mxu0 0
      %659 = vmatprep.subr.bf16.mxu0 0
      %660 = vmatpush1.bf16.msra.mxu0 0
      %661 = vmatprep.mubr.bf16.mxu0 0
      %662 = vmatmul.mubr.bf16.gmra.mrb[0].mxu0 %v627
      %v663 = vpop.f32.mrb[0].mxu0
      %v664 = vadd.f32 0.0, %v663
      %v665 = vpop.f32.mrb[0].mxu0
      %v666 = vpop.f32.mrb[0].mxu0
      %v667 = vpop.f32.mrb[0].mxu0
      %668 = vdwg.mxu0
      %v673 = vunpack.c.l.b16 %v605
      %v674 = vunpack.c.l.b16 %v606
      %v675 = vunpack.c.l.b16 %v607
      %v676 = vunpack.c.l.b16 %v608
      %v677 = vpack.c.b16 %v674, %v673
      %v678 = vpack.c.b16 %v676, %v675
      %v682 = vsel %vm456, %v604, 0
      %684 = vmatprep.subr.bf16.mxu0 0
      %685 = vmatpush1.bf16.msra.mxu0 %v677
      %686 = vmatprep.subr.bf16.mxu0 0
      %687 = vmatpush1.bf16.msra.mxu0 %v678
      %688 = vmatprep.subr.bf16.mxu0 0
      %689 = vmatpush1.bf16.msra.mxu0 0
      %690 = vmatprep.subr.bf16.mxu0 0
      %691 = vmatpush1.bf16.msra.mxu0 0
      %692 = vmatprep.subr.bf16.mxu0 0
      %693 = vmatpush1.bf16.msra.mxu0 0
      %694 = vmatprep.subr.bf16.mxu0 0
      %695 = vmatpush1.bf16.msra.mxu0 0
      %696 = vmatprep.subr.bf16.mxu0 0
      %697 = vmatpush1.bf16.msra.mxu0 0
      %698 = vmatprep.subr.bf16.mxu0 0
      %699 = vmatpush1.bf16.msra.mxu0 0
      %700 = vmatprep.subr.bf16.mxu0 0
      %701 = vmatpush1.bf16.msra.mxu0 0
      %702 = vmatprep.subr.bf16.mxu0 0
      %703 = vmatpush1.bf16.msra.mxu0 0
      %704 = vmatprep.subr.bf16.mxu0 0
      %705 = vmatpush1.bf16.msra.mxu0 0
      %706 = vmatprep.subr.bf16.mxu0 0
      %707 = vmatpush1.bf16.msra.mxu0 0
      %708 = vmatprep.subr.bf16.mxu0 0
      %709 = vmatpush1.bf16.msra.mxu0 0
      %710 = vmatprep.subr.bf16.mxu0 0
      %711 = vmatpush1.bf16.msra.mxu0 0
      %712 = vmatprep.subr.bf16.mxu0 0
      %713 = vmatpush1.bf16.msra.mxu0 0
      %714 = vmatprep.subr.bf16.mxu0 0
      %715 = vmatpush1.bf16.msra.mxu0 0
      %716 = vmatprep.mubr.bf16.mxu0 0
      %717 = vmatmul.mubr.bf16.gmra.mrb[0].mxu0 %v682
      %v718 = vpop.f32.mrb[0].mxu0
      %v719 = vadd.f32 %v664, %v718
      %v720 = vpop.f32.mrb[0].mxu0
      %v721 = vpop.f32.mrb[0].mxu0
      %v722 = vpop.f32.mrb[0].mxu0
      %723 = vdwg.mxu0
      %v724 = vld [vmem:[%s6] sm:$0x1]
      %v726 = vlaneseq
      %v727 = vshrl.u32 %v726, 7
      %v728 = vsub.s32 0, %v727
      %v729 = vrot.slane %v724, %v728
      %v731 = vadd.f32 %v719, %v729
      %v732 = vsub.f32 0.0, %v731
      %v733 = vmul.f32 %v732, 1.442695
      %v734 = vpow.pop %v733
      %v735 = vadd.f32 %v734, 1.0
      %v736 = vrcp.pop %v735
      %v737 = vmul.f32 1.0, %v736
      %v738 = vmul.f32 %v731, %v737
      %v739 = vpack.c.bf16 %v738, %v738
      %v740 = vld [vmem:[%s7] sm:$0xf]
      %v741 = vld [vmem:[%s7 + $0x4] sm:$0xf]
      %v742 = vld [vmem:[%s7 + $0x8] sm:$0xf]
      %v743 = vld [vmem:[%s7 + $0xc] sm:$0xf]
      %v744 = vld [vmem:[%s8] sm:$0x1]
      %v746 = vlaneseq
      %v747 = vshrl.u32 %v746, 7
      %v748 = vsub.s32 0, %v747
      %v749 = vrot.slane %v744, %v748
      %v755 = vunpack.c.l.b16 %v740
      %v756 = vunpack.c.l.b16 %v741
      %v757 = vunpack.c.l.b16 %v742
      %v758 = vunpack.c.l.b16 %v743
      %v759 = vpack.c.b16 %v756, %v755
      %v760 = vpack.c.b16 %v758, %v757
      %v764 = vsel %vm456, %v739, 0
      %766 = vmatprep.subr.bf16.mxu0 0
      %767 = vmatpush1.bf16.msra.mxu0 %v759
      %768 = vmatprep.subr.bf16.mxu0 0
      %769 = vmatpush1.bf16.msra.mxu0 %v760
      %770 = vmatprep.subr.bf16.mxu0 0
      %771 = vmatpush1.bf16.msra.mxu0 0
      %772 = vmatprep.subr.bf16.mxu0 0
      %773 = vmatpush1.bf16.msra.mxu0 0
      %774 = vmatprep.subr.bf16.mxu0 0
      %775 = vmatpush1.bf16.msra.mxu0 0
      %776 = vmatprep.subr.bf16.mxu0 0
      %777 = vmatpush1.bf16.msra.mxu0 0
      %778 = vmatprep.subr.bf16.mxu0 0
      %779 = vmatpush1.bf16.msra.mxu0 0
      %780 = vmatprep.subr.bf16.mxu0 0
      %781 = vmatpush1.bf16.msra.mxu0 0
      %782 = vmatprep.subr.bf16.mxu0 0
      %783 = vmatpush1.bf16.msra.mxu0 0
      %784 = vmatprep.subr.bf16.mxu0 0
      %785 = vmatpush1.bf16.msra.mxu0 0
      %786 = vmatprep.subr.bf16.mxu0 0
      %787 = vmatpush1.bf16.msra.mxu0 0
      %788 = vmatprep.subr.bf16.mxu0 0
      %789 = vmatpush1.bf16.msra.mxu0 0
      %790 = vmatprep.subr.bf16.mxu0 0
      %791 = vmatpush1.bf16.msra.mxu0 0
      %792 = vmatprep.subr.bf16.mxu0 0
      %793 = vmatpush1.bf16.msra.mxu0 0
      %794 = vmatprep.subr.bf16.mxu0 0
      %795 = vmatpush1.bf16.msra.mxu0 0
      %796 = vmatprep.subr.bf16.mxu0 0
      %797 = vmatpush1.bf16.msra.mxu0 0
      %798 = vmatprep.mubr.bf16.mxu0 0
      %799 = vmatmul.mubr.bf16.gmra.mrb[0].mxu0 %v764
      %v800 = vpop.f32.mrb[0].mxu0
      %v801 = vadd.f32 %v749, %v800
      %v802 = vpop.f32.mrb[0].mxu0
      %v803 = vpop.f32.mrb[0].mxu0
      %v804 = vpop.f32.mrb[0].mxu0
      %805 = vdwg.mxu0
      %v806 = vld [vmem:[%s9] sm:$0xf]
      %v807 = vld [vmem:[%s9 + $0x4] sm:$0xf]
      %v808 = vld [vmem:[%s9 + $0x8] sm:$0xf]
      %v809 = vld [vmem:[%s9 + $0xc] sm:$0xf]
      %v810 = vld [vmem:[%s10] sm:$0x1]
      %v812 = vlaneseq
      %v813 = vshrl.u32 %v812, 7
      %v814 = vsub.s32 0, %v813
      %v815 = vrot.slane %v810, %v814
      %v821 = vunpack.c.l.b16 %v806
      %v822 = vunpack.c.l.b16 %v807
      %v823 = vunpack.c.l.b16 %v808
      %v824 = vunpack.c.l.b16 %v809
      %v825 = vpack.c.b16 %v822, %v821
      %v826 = vpack.c.b16 %v824, %v823
      %829 = vmatprep.subr.bf16.mxu0 0
      %830 = vmatpush1.bf16.msra.mxu0 %v825
      %831 = vmatprep.subr.bf16.mxu0 0
      %832 = vmatpush1.bf16.msra.mxu0 %v826
      %833 = vmatprep.subr.bf16.mxu0 0
      %834 = vmatpush1.bf16.msra.mxu0 0
      %835 = vmatprep.subr.bf16.mxu0 0
      %836 = vmatpush1.bf16.msra.mxu0 0
      %837 = vmatprep.subr.bf16.mxu0 0
      %838 = vmatpush1.bf16.msra.mxu0 0
      %839 = vmatprep.subr.bf16.mxu0 0
      %840 = vmatpush1.bf16.msra.mxu0 0
      %841 = vmatprep.subr.bf16.mxu0 0
      %842 = vmatpush1.bf16.msra.mxu0 0
      %843 = vmatprep.subr.bf16.mxu0 0
      %844 = vmatpush1.bf16.msra.mxu0 0
      %845 = vmatprep.subr.bf16.mxu0 0
      %846 = vmatpush1.bf16.msra.mxu0 0
      %847 = vmatprep.subr.bf16.mxu0 0
      %848 = vmatpush1.bf16.msra.mxu0 0
      %849 = vmatprep.subr.bf16.mxu0 0
      %850 = vmatpush1.bf16.msra.mxu0 0
      %851 = vmatprep.subr.bf16.mxu0 0
      %852 = vmatpush1.bf16.msra.mxu0 0
      %853 = vmatprep.subr.bf16.mxu0 0
      %854 = vmatpush1.bf16.msra.mxu0 0
      %855 = vmatprep.subr.bf16.mxu0 0
      %856 = vmatpush1.bf16.msra.mxu0 0
      %857 = vmatprep.subr.bf16.mxu0 0
      %858 = vmatpush1.bf16.msra.mxu0 0
      %859 = vmatprep.subr.bf16.mxu0 0
      %860 = vmatpush1.bf16.msra.mxu0 0
      %861 = vmatprep.mubr.bf16.mxu0 0
      %862 = vmatmul.mubr.bf16.gmra.mrb[0].mxu0 %v764
      %v863 = vpop.f32.mrb[0].mxu0
      %v864 = vadd.f32 %v815, %v863
      %v865 = vpop.f32.mrb[0].mxu0
      %v866 = vpop.f32.mrb[0].mxu0
      %v867 = vpop.f32.mrb[0].mxu0
      %868 = vdwg.mxu0
      %vm869 = vcmask 130048
      %870 = vst.msk [vmem:[%s432] sm:$0xff] %vm869, %v801
      %v871 = vld [vmem:[%s3] sm:$0xf]
      %v872 = vld [vmem:[%s3 + $0x4] sm:$0xf]
      %v873 = vld [vmem:[%s3 + $0x8] sm:$0xf]
      %v874 = vld [vmem:[%s3 + $0xc] sm:$0xf]
      %v879 = vunpack.c.l.b16 %v871
      %v880 = vunpack.c.l.b16 %v872
      %v881 = vunpack.c.l.b16 %v873
      %v882 = vunpack.c.l.b16 %v874
      %v883 = vpack.c.b16 %v880, %v879
      %v884 = vpack.c.b16 %v882, %v881
      %887 = vmatprep.subr.bf16.mxu0 0
      %888 = vmatpush1.bf16.msra.mxu0 %v883
      %889 = vmatprep.subr.bf16.mxu0 0
      %890 = vmatpush1.bf16.msra.mxu0 %v884
      %891 = vmatprep.subr.bf16.mxu0 0
      %892 = vmatpush1.bf16.msra.mxu0 0
      %893 = vmatprep.subr.bf16.mxu0 0
      %894 = vmatpush1.bf16.msra.mxu0 0
      %895 = vmatprep.subr.bf16.mxu0 0
      %896 = vmatpush1.bf16.msra.mxu0 0
      %897 = vmatprep.subr.bf16.mxu0 0
      %898 = vmatpush1.bf16.msra.mxu0 0
      %899 = vmatprep.subr.bf16.mxu0 0
      %900 = vmatpush1.bf16.msra.mxu0 0
      %901 = vmatprep.subr.bf16.mxu0 0
      %902 = vmatpush1.bf16.msra.mxu0 0
      %903 = vmatprep.subr.bf16.mxu0 0
      %904 = vmatpush1.bf16.msra.mxu0 0
      %905 = vmatprep.subr.bf16.mxu0 0
      %906 = vmatpush1.bf16.msra.mxu0 0
      %907 = vmatprep.subr.bf16.mxu0 0
      %908 = vmatpush1.bf16.msra.mxu0 0
      %909 = vmatprep.subr.bf16.mxu0 0
      %910 = vmatpush1.bf16.msra.mxu0 0
      %911 = vmatprep.subr.bf16.mxu0 0
      %912 = vmatpush1.bf16.msra.mxu0 0
      %913 = vmatprep.subr.bf16.mxu0 0
      %914 = vmatpush1.bf16.msra.mxu0 0
      %915 = vmatprep.subr.bf16.mxu0 0
      %916 = vmatpush1.bf16.msra.mxu0 0
      %917 = vmatprep.subr.bf16.mxu0 0
      %918 = vmatpush1.bf16.msra.mxu0 0
      %919 = vmatprep.mubr.bf16.mxu0 0
      %920 = vmatmul.mubr.bf16.gmra.mrb[0].mxu0 %v458
      %v921 = vpop.f32.mrb[0].mxu0
      %v922 = vadd.f32 0.0, %v921
      %v923 = vpop.f32.mrb[0].mxu0
      %v924 = vpop.f32.mrb[0].mxu0
      %v925 = vpop.f32.mrb[0].mxu0
      %926 = vdwg.mxu0
      %v927 = vmul.f32 %v864, %v922
      %928 = vst.msk [vmem:[%s436] sm:$0xff] %vm869, %v927
      %v929 = vld [vmem:[%s3] sm:$0xf]
      %v930 = vld [vmem:[%s3 + $0x4] sm:$0xf]
      %v931 = vld [vmem:[%s3 + $0x8] sm:$0xf]
      %v932 = vld [vmem:[%s3 + $0xc] sm:$0xf]
      %v937 = vunpack.c.l.b16 %v929
      %v938 = vunpack.c.l.b16 %v930
      %v939 = vunpack.c.l.b16 %v931
      %v940 = vunpack.c.l.b16 %v932
      %v941 = vpack.c.b16 %v938, %v937
      %v942 = vpack.c.b16 %v940, %v939
      %945 = vmatprep.subr.bf16.mxu0 0
      %946 = vmatpush1.bf16.msra.mxu0 %v941
      %947 = vmatprep.subr.bf16.mxu0 0
      %948 = vmatpush1.bf16.msra.mxu0 %v942
      %949 = vmatprep.subr.bf16.mxu0 0
      %950 = vmatpush1.bf16.msra.mxu0 0
      %951 = vmatprep.subr.bf16.mxu0 0
      %952 = vmatpush1.bf16.msra.mxu0 0
      %953 = vmatprep.subr.bf16.mxu0 0
      %954 = vmatpush1.bf16.msra.mxu0 0
      %955 = vmatprep.subr.bf16.mxu0 0
      %956 = vmatpush1.bf16.msra.mxu0 0
      %957 = vmatprep.subr.bf16.mxu0 0
      %958 = vmatpush1.bf16.msra.mxu0 0
      %959 = vmatprep.subr.bf16.mxu0 0
      %960 = vmatpush1.bf16.msra.mxu0 0
      %961 = vmatprep.subr.bf16.mxu0 0
      %962 = vmatpush1.bf16.msra.mxu0 0
      %963 = vmatprep.subr.bf16.mxu0 0
      %964 = vmatpush1.bf16.msra.mxu0 0
      %965 = vmatprep.subr.bf16.mxu0 0
      %966 = vmatpush1.bf16.msra.mxu0 0
      %967 = vmatprep.subr.bf16.mxu0 0
      %968 = vmatpush1.bf16.msra.mxu0 0
      %969 = vmatprep.subr.bf16.mxu0 0
      %970 = vmatpush1.bf16.msra.mxu0 0
      %971 = vmatprep.subr.bf16.mxu0 0
      %972 = vmatpush1.bf16.msra.mxu0 0
      %973 = vmatprep.subr.bf16.mxu0 0
      %974 = vmatpush1.bf16.msra.mxu0 0
      %975 = vmatprep.subr.bf16.mxu0 0
      %976 = vmatpush1.bf16.msra.mxu0 0
      %977 = vmatprep.mubr.bf16.mxu0 0
      %978 = vmatmul.mubr.bf16.gmra.mrb[0].mxu0 %v504
      %v979 = vpop.f32.mrb[0].mxu0
      %v980 = vadd.f32 0.0, %v979
      %v981 = vpop.f32.mrb[0].mxu0
      %v982 = vpop.f32.mrb[0].mxu0
      %v983 = vpop.f32.mrb[0].mxu0
      %984 = vdwg.mxu0
      %v985 = vmul.f32 %v864, %v980
      %987 = vrot.lane.b32.xlu0 %v985, 16
      %v988 = vpop.permute.xlu0 %987
      %vm990 = vcmask 261248
      %991 = vst.msk [vmem:[%s436] sm:$0xff] %vm990, %v988
      %v992 = vld [vmem:[%s3] sm:$0xf]
      %v993 = vld [vmem:[%s3 + $0x4] sm:$0xf]
      %v994 = vld [vmem:[%s3 + $0x8] sm:$0xf]
      %v995 = vld [vmem:[%s3 + $0xc] sm:$0xf]
      %v1000 = vunpack.c.l.b16 %v992
      %v1001 = vunpack.c.l.b16 %v993
      %v1002 = vunpack.c.l.b16 %v994
      %v1003 = vunpack.c.l.b16 %v995
      %v1004 = vpack.c.b16 %v1001, %v1000
      %v1005 = vpack.c.b16 %v1003, %v1002
      %1008 = vmatprep.subr.bf16.mxu0 0
      %1009 = vmatpush1.bf16.msra.mxu0 %v1004
      %1010 = vmatprep.subr.bf16.mxu0 0
      %1011 = vmatpush1.bf16.msra.mxu0 %v1005
      %1012 = vmatprep.subr.bf16.mxu0 0
      %1013 = vmatpush1.bf16.msra.mxu0 0
      %1014 = vmatprep.subr.bf16.mxu0 0
      %1015 = vmatpush1.bf16.msra.mxu0 0
      %1016 = vmatprep.subr.bf16.mxu0 0
      %1017 = vmatpush1.bf16.msra.mxu0 0
      %1018 = vmatprep.subr.bf16.mxu0 0
      %1019 = vmatpush1.bf16.msra.mxu0 0
      %1020 = vmatprep.subr.bf16.mxu0 0
      %1021 = vmatpush1.bf16.msra.mxu0 0
      %1022 = vmatprep.subr.bf16.mxu0 0
      %1023 = vmatpush1.bf16.msra.mxu0 0
      %1024 = vmatprep.subr.bf16.mxu0 0
      %1025 = vmatpush1.bf16.msra.mxu0 0
      %1026 = vmatprep.subr.bf16.mxu0 0
      %1027 = vmatpush1.bf16.msra.mxu0 0
      %1028 = vmatprep.subr.bf16.mxu0 0
      %1029 = vmatpush1.bf16.msra.mxu0 0
      %1030 = vmatprep.subr.bf16.mxu0 0
      %1031 = vmatpush1.bf16.msra.mxu0 0
      %1032 = vmatprep.subr.bf16.mxu0 0
      %1033 = vmatpush1.bf16.msra.mxu0 0
      %1034 = vmatprep.subr.bf16.mxu0 0
      %1035 = vmatpush1.bf16.msra.mxu0 0
      %1036 = vmatprep.subr.bf16.mxu0 0
      %1037 = vmatpush1.bf16.msra.mxu0 0
      %1038 = vmatprep.subr.bf16.mxu0 0
      %1039 = vmatpush1.bf16.msra.mxu0 0
      %1040 = vmatprep.mubr.bf16.mxu0 0
      %1041 = vmatmul.mubr.bf16.gmra.mrb[0].mxu0 %v549
      %v1042 = vpop.f32.mrb[0].mxu0
      %v1043 = vadd.f32 0.0, %v1042
      %v1044 = vpop.f32.mrb[0].mxu0
      %v1045 = vpop.f32.mrb[0].mxu0
      %v1046 = vpop.f32.mrb[0].mxu0
      %1047 = vdwg.mxu0
      %v1048 = vmul.f32 %v864, %v1043
      %1050 = vrot.lane.b32.xlu0 %v1048, 32
      %v1051 = vpop.permute.xlu0 %1050
      %vm1053 = vcmask 392448
      %1054 = vst.msk [vmem:[%s436] sm:$0xff] %vm1053, %v1051
      %p1055 = scmp.lt.s32.totalorder %s24, 2
      %s1056 = scalar_select %p1055, %s24, 2
      %s1057 = smul.addr %s1056, 8
      %s1058 = scalar_lea.vmem %s11, %s1057
      %p1059 = scmp.lt.s32.totalorder %s24, 2
      %s1060 = scalar_select %p1059, %s24, 2
      %s1061 = smul.addr %s1060, 8
      %s1062 = scalar_lea.vmem %s12, %s1061
      // Predicated region
      $region65: #{gated_equivariant_block.1} parent=63 // pred_check
        %p1063 = pneg %p283
      $region66: #{gated_equivariant_block.1} parent=63 // pred_check_branch
        %1065 = sbr.rel (%p1063) target = $region68
      $region67: #{gated_equivariant_block.1} parent=63 // pred_region
        _
      $region68: #{gated_equivariant_block.1} parent=63 // pred_fallthru
        _
      // Predicated region
      $region69: #{gated_equivariant_block.1} parent=63 // pred_check
        %p1066 = pneg %p309
      $region70: #{gated_equivariant_block.1} parent=63 // pred_check_branch
        %1068 = sbr.rel (%p1066) target = $region72
      $region71: #{gated_equivariant_block.1} parent=63 // pred_region
        _
      $region72: #{gated_equivariant_block.1} parent=63 // pred_fallthru
        _
    $region64: #{gated_equivariant_block.1} parent=5 // pred_fallthru
      _
    %p1069 = scmp.le.s32.totalorder 2, %s19
    // Predicated region
    $region73: #{gated_equivariant_block.1} parent=5 // pred_check
      %p1070 = pneg %p1069
    $region74: #{gated_equivariant_block.1} parent=5 // pred_check_branch
      %1072 = sbr.rel (%p1070) target = $region76
    $region75: #{gated_equivariant_block.1} parent=5 // pred_region
      %s1073 = ssub.s32 %s19, 2
      // Predicated region
      $region77: #{gated_equivariant_block.1} parent=75 // pred_check
        %p1074 = pneg %p289
      $region78: #{gated_equivariant_block.1} parent=75 // pred_check_branch
        %1076 = sbr.rel (%p1074) target = $region80
      $region79: #{gated_equivariant_block.1} parent=75 // pred_region
        %p1077 = scmp.lt.s32.totalorder %s25, 2
        %s1078 = scalar_select %p1077, %s25, 2
        %s1079 = smul.addr %s1078, 8
        %s1080 = scalar_lea.vmem %s11, %s1079
      $region80: #{gated_equivariant_block.1} parent=75 // pred_fallthru
        _
      // Predicated region
      $region81: #{gated_equivariant_block.1} parent=75 // pred_check
        %p1081 = pneg %p315
      $region82: #{gated_equivariant_block.1} parent=75 // pred_check_branch
        %1083 = sbr.rel (%p1081) target = $region84
      $region83: #{gated_equivariant_block.1} parent=75 // pred_region
        %p1084 = scmp.lt.s32.totalorder %s25, 2
        %s1085 = scalar_select %p1084, %s25, 2
        %s1086 = smul.addr %s1085, 8
        %s1087 = scalar_lea.vmem %s12, %s1086
      $region84: #{gated_equivariant_block.1} parent=75 // pred_fallthru
        _
    $region76: #{gated_equivariant_block.1} parent=5 // pred_fallthru
      _
  $region6: #{gated_equivariant_block.1} parent=0 // loop_footer
    %s23 = sadd.s32 1, %s19
  $region7: #{gated_equivariant_block.1} parent=0 // loop_footer_branch
    %18 = sbr.rel target = $region3
  $region8: #{gated_equivariant_block.1} parent=0 // loop_exit
    _

</llo_original>
